<compile_context>
chip_gen: v7x
topology: tpu7x:2x2x1
jax: 0.10.0
libtpu: 0.0.40
codegen_flags: <defaults>
</compile_context>

<pallas_src>
import jax
import jax.numpy as jnp
from jax.experimental import pallas as pl
from jax.experimental.pallas import tpu as pltpu

_LANE = 128            # last-dim tiling unit (vreg lanes)
_SUBLANE_BF16 = 16     # bf16 packs 2 rows/sublane -> keep batch tiles % 16
_VMEM_CAP_BYTES = 48 * 1024 * 1024   # safe on v7x (64 MiB physical); fine on v5e/v6e


def _round_up(n, m):
    return ((n + m - 1) // m) * m


def _mlp_kernel(x_ref, w1_ref, b1_ref, w2_ref, b2_ref, w3_ref, b3_ref, o_ref):
    """Fused 3-layer MLP on one batch tile.

    x/W refs are bf16 (MXU-native input dtype); matmuls accumulate in f32 and
    bias-add / ReLU run on the VPU in f32.  Dropout layers are identity
    (eval-mode semantics).
    """
    # Hoist the (1, N) bias loads once; the (M,N)+(1,N) broadcast happens once
    # per layer (no re-materialized broadcast_in_dim inside the expressions).
    b1 = b1_ref[...]
    b2 = b2_ref[...]
    b3 = b3_ref[...]

    # Layer 1: Linear + ReLU   (Dropout == identity in eval mode)
    h1 = jnp.dot(x_ref[...], w1_ref[...],
                 preferred_element_type=jnp.float32) + b1
    h1 = jnp.maximum(h1, 0.0)

    # Layer 2: Linear + ReLU   (Dropout == identity in eval mode)
    h2 = jnp.dot(h1.astype(jnp.bfloat16), w2_ref[...],
                 preferred_element_type=jnp.float32) + b2
    h2 = jnp.maximum(h2, 0.0)

    # Output layer: Linear (no activation); bf16 writeback halves store traffic.
    out = jnp.dot(h2.astype(jnp.bfloat16), w3_ref[...],
                  preferred_element_type=jnp.float32) + b3
    o_ref[...] = out.astype(o_ref.dtype)


def init_params(key, input_size, hidden_sizes, output_size):
    """Deterministic PyTorch-style init: uniform(-1/sqrt(fan_in), +1/sqrt(fan_in)).

    Weights are stored as [in, out] (transposed vs. PyTorch's [out, in]) so the
    kernel computes plain `x @ W + b`.  Biases are [1, out].
    """
    sizes = [input_size] + list(hidden_sizes) + [output_size]
    params = {}
    for i in range(len(sizes) - 1):
        fan_in, fan_out = sizes[i], sizes[i + 1]
        key, kw, kb = jax.random.split(key, 3)
        bound = 1.0 / jnp.sqrt(jnp.float32(fan_in))
        params[f"w{i + 1}"] = jax.random.uniform(
            kw, (fan_in, fan_out), jnp.float32, -bound, bound)
        params[f"b{i + 1}"] = jax.random.uniform(
            kb, (1, fan_out), jnp.float32, -bound, bound)
    return params


def prepare_params(params):
    """One-time prep: zero-pad feature dims to multiples of 128 lanes and cast
    the weights to bf16 (MXU input dtype).  Biases stay f32 (VPU bias-add).
    Padded zero rows/cols are exact no-ops through Linear+ReLU."""
    n_layers = len(params) // 2
    prepped = {}
    for i in range(1, n_layers + 1):
        w = params[f"w{i}"]
        b = params[f"b{i}"]
        in_p = _round_up(w.shape[0], _LANE)
        out_p = _round_up(w.shape[1], _LANE)
        wp = jnp.pad(w, ((0, in_p - w.shape[0]), (0, out_p - w.shape[1])))
        bp = jnp.pad(b, ((0, 0), (0, out_p - b.shape[1])))
        prepped[f"w{i}"] = wp.astype(jnp.bfloat16)
        prepped[f"b{i}"] = bp.astype(jnp.float32)
    return prepped


def _forward_xla(x, prepped, out_size):
    """Pure-JAX fallback for tiny batches (Pallas is pure overhead there).
    Same numerics as the kernel: bf16 MXU inputs, f32 accumulation."""
    in_size = x.shape[1]
    h = jnp.maximum(
        jnp.dot(x.astype(jnp.bfloat16), prepped["w1"][:in_size],
                preferred_element_type=jnp.float32) + prepped["b1"], 0.0)
    h = jnp.maximum(
        jnp.dot(h.astype(jnp.bfloat16), prepped["w2"],
                preferred_element_type=jnp.float32) + prepped["b2"], 0.0)
    out = jnp.dot(h.astype(jnp.bfloat16), prepped["w3"],
                  preferred_element_type=jnp.float32) + prepped["b3"]
    return out[:, :out_size]


def desspression_forward(x, prepped, out_size, *, max_tile_rows=1024,
                         out_dtype=jnp.bfloat16, min_pallas_batch=128):
    """Run the fused MLP Pallas kernel.

    Args:
      x:        [batch, input_size] f32
      prepped:  output of prepare_params (padded bf16 weights, padded f32 biases)
      out_size: true (unpadded) output feature size
    Returns:
      [batch, out_size] in out_dtype (bf16 by default; cast outside if f32 needed)
    """
    batch, in_size = x.shape

    # Small-batch dispatch: at tiny batches the grid-step cost, the padding
    # round-trip and the output slice dwarf the <1 MFLOP of compute.
    if batch < min_pallas_batch:
        return _forward_xla(x, prepped, out_size).astype(out_dtype)

    in_pad = prepped["w1"].shape[0]
    h1_pad = prepped["w1"].shape[1]
    h2_pad = prepped["w2"].shape[1]
    out_pad = prepped["w3"].shape[1]
    out_itemsize = jnp.dtype(out_dtype).itemsize

    # Batch tiling: multiples of 16 (bf16 sublane pack unit); guarantee >= 2
    # grid tiles whenever the batch allows it (v7x megacore has 2 TCs).
    batch_pad16 = _round_up(batch, _SUBLANE_BF16)
    tile_rows = min(max_tile_rows,
                    max(_SUBLANE_BF16,
                        _round_up(pl.cdiv(batch_pad16, 2), _SUBLANE_BF16)))

    # Derive the VMEM budget from the actual buffers (x/out double-buffered,
    # weights single-buffered, f32 intermediates) + 20% headroom; shrink the
    # batch tile before ever exceeding the v7x-safe 48 MiB cap.
    def _vmem_bytes(tr):
        x_bytes = 2 * tr * in_pad * 2                       # bf16 x tile, 2 bufs
        o_bytes = 2 * tr * out_pad * out_itemsize           # out tile, 2 bufs
        w_bytes = sum(int(prepped[f"w{i}"].size) * 2 for i in (1, 2, 3))  # Buffered(1)
        b_bytes = sum(int(prepped[f"b{i}"].size) * 4 for i in (1, 2, 3))
        act_bytes = tr * (h1_pad + h2_pad + out_pad) * 4    # f32 intermediates
        return x_bytes + o_bytes + w_bytes + b_bytes + act_bytes

    while tile_rows > _SUBLANE_BF16 and int(1.2 * _vmem_bytes(tile_rows)) > _VMEM_CAP_BYTES:
        tile_rows = max(_SUBLANE_BF16, _round_up(tile_rows // 2, _SUBLANE_BF16))
    vmem_limit = min(_VMEM_CAP_BYTES,
                     max(4 * 1024 * 1024, int(1.2 * _vmem_bytes(tile_rows))))

    batch_pad = _round_up(batch, tile_rows)
    num_tiles = batch_pad // tile_rows

    # Fused pad + cast of x in a single op (one HBM pass).
    xp = jnp.pad(x.astype(jnp.bfloat16),
                 ((0, batch_pad - batch), (0, in_pad - in_size)))

    # Advisory cost estimate so XLA can schedule neighbours around this call.
    flops = 2 * batch_pad * (in_pad * h1_pad + h1_pad * h2_pad + h2_pad * out_pad)
    bytes_accessed = int(
        batch_pad * in_pad * 2
        + sum(int(v.size) * v.dtype.itemsize for v in prepped.values())
        + batch_pad * out_pad * out_itemsize)
    cost = pl.CostEstimate(flops=int(flops), transcendentals=0,
                           bytes_accessed=bytes_accessed)

    # Weights/biases: constant block index -> resident in VMEM; Buffered(1)
    # avoids a wasted second buffer for blocks that never change.
    def resident(shape):
        return pl.BlockSpec(shape, lambda i: (0,) * len(shape),
                            pipeline_mode=pl.Buffered(1))

    out_padded = pl.pallas_call(
        _mlp_kernel,
        out_shape=jax.ShapeDtypeStruct((batch_pad, out_pad), out_dtype),
        grid=(num_tiles,),
        in_specs=[
            pl.BlockSpec((tile_rows, in_pad), lambda i: (i, 0)),   # x: batch-tiled
            resident(prepped["w1"].shape), resident(prepped["b1"].shape),
            resident(prepped["w2"].shape), resident(prepped["b2"].shape),
            resident(prepped["w3"].shape), resident(prepped["b3"].shape),
        ],
        out_specs=pl.BlockSpec((tile_rows, out_pad), lambda i: (i, 0)),
        compiler_params=pltpu.CompilerParams(
            dimension_semantics=("parallel",),   # megacore sharding on v7x
            vmem_limit_bytes=vmem_limit,
        ),
        cost_estimate=cost,
    )(xp, prepped["w1"], prepped["b1"], prepped["w2"], prepped["b2"],
      prepped["w3"], prepped["b3"])

    return out_padded[:batch, :out_size]


def reference_forward(x, params):
    """Pure-JAX reference matching the kernel numerics (bf16 MXU inputs,
    f32 accumulation, eval-mode dropout == identity)."""
    def dot_bf16(a, w):
        return jnp.dot(a.astype(jnp.bfloat16), w.astype(jnp.bfloat16),
                       preferred_element_type=jnp.float32)
    h = jnp.maximum(dot_bf16(x, params["w1"]) + params["b1"], 0.0)
    h = jnp.maximum(dot_bf16(h, params["w2"]) + params["b2"], 0.0)
    return dot_bf16(h, params["w3"]) + params["b3"]


if __name__ == "__main__":
    # Shapes consistent with the module: x is [batch, input_size].
    input_size = 32
    hidden_sizes = [64, 32]
    output_size = 8

    key = jax.random.PRNGKey(0)
    key, kx_big, kx_small = jax.random.split(key, 3)
    params = init_params(key, input_size, hidden_sizes, output_size)
    prepped = prepare_params(params)

    # 1) Pallas path: batch large enough to tile into >= 2 grid steps.
    batch = 256
    x = jax.random.normal(kx_big, (batch, input_size), jnp.float32)
    out = jax.block_until_ready(desspression_forward(x, prepped, output_size))
    ref = reference_forward(x, params)
    assert out.shape == (batch, output_size), out.shape
    assert jnp.allclose(out.astype(jnp.float32), ref, atol=3e-2, rtol=3e-2), \
        "Pallas output mismatch vs reference"

    # 2) Small-batch dispatch path (bypasses Pallas; Pallas is pure overhead here).
    x_small = jax.random.normal(kx_small, (8, input_size), jnp.float32)
    out_small = jax.block_until_ready(
        desspression_forward(x_small, prepped, output_size))
    ref_small = reference_forward(x_small, params)
    assert out_small.shape == (8, output_size), out_small.shape
    assert jnp.allclose(out_small.astype(jnp.float32), ref_small,
                        atol=3e-2, rtol=3e-2), "small-batch mismatch vs reference"

    print("KERNEL_OK")
</pallas_src>

<mosaic_0001>
module attributes {stable_mosaic.version = 11 : i64} {
  func.func @_mlp_kernel(%arg0: i32, %arg1: memref<128x128xbf16, #tpu.memory_space<vmem>>, %arg2: memref<128x128xbf16, #tpu.memory_space<vmem>>, %arg3: memref<1x128xf32, #tpu.memory_space<vmem>>, %arg4: memref<128x128xbf16, #tpu.memory_space<vmem>>, %arg5: memref<1x128xf32, #tpu.memory_space<vmem>>, %arg6: memref<128x128xbf16, #tpu.memory_space<vmem>>, %arg7: memref<1x128xf32, #tpu.memory_space<vmem>>, %arg8: memref<128x128xbf16, #tpu.memory_space<vmem>>) attributes {dimension_semantics = [#tpu.dimension_semantics<parallel>], iteration_bounds = array<i64: 2>, scalar_prefetch = 0 : i64, scratch_operands = 0 : i64, tpu.core_type = #tpu.core_type<tc>, window_params = [{transform_indices = @transform_0, window_bounds = array<i64: 128, 128>}, {pipeline_mode = #tpu.pipeline_mode<synchronous>, transform_indices = @transform_1, window_bounds = array<i64: 128, 128>}, {pipeline_mode = #tpu.pipeline_mode<synchronous>, transform_indices = @transform_2, window_bounds = array<i64: 1, 128>}, {pipeline_mode = #tpu.pipeline_mode<synchronous>, transform_indices = @transform_3, window_bounds = array<i64: 128, 128>}, {pipeline_mode = #tpu.pipeline_mode<synchronous>, transform_indices = @transform_4, window_bounds = array<i64: 1, 128>}, {pipeline_mode = #tpu.pipeline_mode<synchronous>, transform_indices = @transform_5, window_bounds = array<i64: 128, 128>}, {pipeline_mode = #tpu.pipeline_mode<synchronous>, transform_indices = @transform_6, window_bounds = array<i64: 1, 128>}, {transform_indices = @transform_7, window_bounds = array<i64: 128, 128>}]} {
    %c0 = arith.constant 0 : index
    %c0_0 = arith.constant 0 : index
    %0 = vector.load %arg3[%c0, %c0_0] : memref<1x128xf32, #tpu.memory_space<vmem>>, vector<1x128xf32>
    %c0_1 = arith.constant 0 : index
    %c0_2 = arith.constant 0 : index
    %1 = vector.load %arg5[%c0_1, %c0_2] : memref<1x128xf32, #tpu.memory_space<vmem>>, vector<1x128xf32>
    %c0_3 = arith.constant 0 : index
    %c0_4 = arith.constant 0 : index
    %2 = vector.load %arg7[%c0_3, %c0_4] : memref<1x128xf32, #tpu.memory_space<vmem>>, vector<1x128xf32>
    %c0_5 = arith.constant 0 : index
    %c0_6 = arith.constant 0 : index
    %3 = vector.load %arg1[%c0_5, %c0_6] : memref<128x128xbf16, #tpu.memory_space<vmem>>, vector<128x128xbf16>
    %c0_7 = arith.constant 0 : index
    %c0_8 = arith.constant 0 : index
    %4 = vector.load %arg2[%c0_7, %c0_8] : memref<128x128xbf16, #tpu.memory_space<vmem>>, vector<128x128xbf16>
    %cst = arith.constant dense<0.000000e+00> : vector<128x128xf32>
    %5 = tpu.matmul %3, %4, %cst {dimension_numbers = #tpu.dot_dimension_numbers<[1], [0], [0], [1], [0, 0, 1, 1], [], []>} : vector<128x128xbf16>, vector<128x128xbf16>, vector<128x128xf32> -> vector<128x128xf32>
    %6 = vector.broadcast %0 : vector<1x128xf32> to vector<128x128xf32>
    %7 = arith.addf %5, %6 : vector<128x128xf32>
    %cst_9 = arith.constant 0.000000e+00 : f32
    %8 = vector.broadcast %cst_9 : f32 to vector<128x128xf32>
    %9 = arith.maximumf %7, %8 : vector<128x128xf32>
    %10 = arith.truncf %9 : vector<128x128xf32> to vector<128x128xbf16>
    %c0_10 = arith.constant 0 : index
    %c0_11 = arith.constant 0 : index
    %11 = vector.load %arg4[%c0_10, %c0_11] : memref<128x128xbf16, #tpu.memory_space<vmem>>, vector<128x128xbf16>
    %cst_12 = arith.constant dense<0.000000e+00> : vector<128x128xf32>
    %12 = tpu.matmul %10, %11, %cst_12 {dimension_numbers = #tpu.dot_dimension_numbers<[1], [0], [0], [1], [0, 0, 1, 1], [], []>} : vector<128x128xbf16>, vector<128x128xbf16>, vector<128x128xf32> -> vector<128x128xf32>
    %13 = vector.broadcast %1 : vector<1x128xf32> to vector<128x128xf32>
    %14 = arith.addf %12, %13 : vector<128x128xf32>
    %cst_13 = arith.constant 0.000000e+00 : f32
    %15 = vector.broadcast %cst_13 : f32 to vector<128x128xf32>
    %16 = arith.maximumf %14, %15 : vector<128x128xf32>
    %17 = arith.truncf %16 : vector<128x128xf32> to vector<128x128xbf16>
    %c0_14 = arith.constant 0 : index
    %c0_15 = arith.constant 0 : index
    %18 = vector.load %arg6[%c0_14, %c0_15] : memref<128x128xbf16, #tpu.memory_space<vmem>>, vector<128x128xbf16>
    %cst_16 = arith.constant dense<0.000000e+00> : vector<128x128xf32>
    %19 = tpu.matmul %17, %18, %cst_16 {dimension_numbers = #tpu.dot_dimension_numbers<[1], [0], [0], [1], [0, 0, 1, 1], [], []>} : vector<128x128xbf16>, vector<128x128xbf16>, vector<128x128xf32> -> vector<128x128xf32>
    %20 = vector.broadcast %2 : vector<1x128xf32> to vector<128x128xf32>
    %21 = arith.addf %19, %20 : vector<128x128xf32>
    %22 = arith.truncf %21 : vector<128x128xf32> to vector<128x128xbf16>
    %c0_17 = arith.constant 0 : index
    %c0_18 = arith.constant 0 : index
    %23 = vector.load %arg8[%c0_17, %c0_18] : memref<128x128xbf16, #tpu.memory_space<vmem>>, vector<128x128xbf16>
    tpu.vector_store %arg8[%c0_17, %c0_18], %22 {strides = array<i32>} : memref<128x128xbf16, #tpu.memory_space<vmem>>, vector<128x128xbf16>,
    return
  }
  func.func @transform_0(%arg0: i32) -> (i32, i32) {
    %c0_i32 = arith.constant 0 : i32
    %c0_i32_0 = arith.constant 0 : i32
    return %arg0, %c0_i32 : i32, i32
  }
  func.func @transform_1(%arg0: i32) -> (i32, i32) {
    %c0_i32 = arith.constant 0 : i32
    %c0_i32_0 = arith.constant 0 : i32
    %c0_i32_1 = arith.constant 0 : i32
    return %c0_i32, %c0_i32_0 : i32, i32
  }
  func.func @transform_2(%arg0: i32) -> (i32, i32) {
    %c0_i32 = arith.constant 0 : i32
    %c0_i32_0 = arith.constant 0 : i32
    %c0_i32_1 = arith.constant 0 : i32
    return %c0_i32, %c0_i32_0 : i32, i32
  }
  func.func @transform_3(%arg0: i32) -> (i32, i32) {
    %c0_i32 = arith.constant 0 : i32
    %c0_i32_0 = arith.constant 0 : i32
    %c0_i32_1 = arith.constant 0 : i32
    return %c0_i32, %c0_i32_0 : i32, i32
  }
  func.func @transform_4(%arg0: i32) -> (i32, i32) {
    %c0_i32 = arith.constant 0 : i32
    %c0_i32_0 = arith.constant 0 : i32
    %c0_i32_1 = arith.constant 0 : i32
    return %c0_i32, %c0_i32_0 : i32, i32
  }
  func.func @transform_5(%arg0: i32) -> (i32, i32) {
    %c0_i32 = arith.constant 0 : i32
    %c0_i32_0 = arith.constant 0 : i32
    %c0_i32_1 = arith.constant 0 : i32
    return %c0_i32, %c0_i32_0 : i32, i32
  }
  func.func @transform_6(%arg0: i32) -> (i32, i32) {
    %c0_i32 = arith.constant 0 : i32
    %c0_i32_0 = arith.constant 0 : i32
    %c0_i32_1 = arith.constant 0 : i32
    return %c0_i32, %c0_i32_0 : i32, i32
  }
  func.func @transform_7(%arg0: i32) -> (i32, i32) {
    %c0_i32 = arith.constant 0 : i32
    %c0_i32_0 = arith.constant 0 : i32
    return %arg0, %c0_i32 : i32, i32
  }
}

</mosaic_0001>

<llo_original>
// kernel: tpu_custom_call.1
$region0: #{tpu_custom_call.1}
  #allocation0 [shape = 'u32[]', space=smem, size = 0x4, offset = 0x4, fixed_abs, tag = 'smem constant byte address 0x4 - core index']
  #allocation1 [shape = 'u32[144,128]{1,0:T(1,128)}', space=vmem, size = 0x12000, scoped, tag = 'internal scratch']
  %s0 = inlined_call_operand.hbm [shape: bf16[256,128], index: 0, kind: input, shape index: {}]
  %s1 = inlined_call_operand.hbm [shape: bf16[128,128], index: 1, kind: input, shape index: {}]
  %s2 = inlined_call_operand.vmem [shape: f32[1,128], index: 2, kind: input, shape index: {}]
  %s3 = inlined_call_operand.hbm [shape: bf16[128,128], index: 3, kind: input, shape index: {}]
  %s4 = inlined_call_operand.vmem [shape: f32[1,128], index: 4, kind: input, shape index: {}]
  %s5 = inlined_call_operand.hbm [shape: bf16[128,128], index: 5, kind: input, shape index: {}]
  %s6 = inlined_call_operand.vmem [shape: f32[1,128], index: 6, kind: input, shape index: {}]
  %s7 = inlined_call_operand.hbm [shape: bf16[256,128], index: 7, kind: output, shape index: {}]
  %s8 = sld [smem:[#allocation0]]
  $region77: #{tpu_custom_call.1} parent=0
    _
  %s10 = ssub.s32 1, %s8
  %s11 = scalar_select 0, %s10, %s8
  $region1: #{tpu_custom_call.1} parent=0
    #allocation2 [shape = 'u8[65536]{0}', space=vmem, size = 0x10000, scoped, tag = 'input window, operand 0']
    #allocation3 [shape = 's32[2]{0}', space=sflag, size = 0x8, scoped, tag = 'scoped memory for tpu_custom_call.1']
    #allocation4 [shape = 's32[2]{0}', space=sflag, size = 0x8, scoped, tag = 'scoped memory for tpu_custom_call.1']
    #allocation5 [shape = 'u8[32768]{0}', space=vmem, size = 0x8000, scoped, tag = 'input window, operand 1, single buffered']
    #allocation6 [shape = 's32[1]{0}', space=sflag, size = 0x4, scoped, tag = 'scoped memory for tpu_custom_call.1']
    #allocation7 [shape = 'u8[32768]{0}', space=vmem, size = 0x8000, scoped, tag = 'input window, operand 3, single buffered']
    #allocation8 [shape = 'u8[32768]{0}', space=vmem, size = 0x8000, scoped, tag = 'input window, operand 5, single buffered']
    #allocation9 [shape = 's32[1]{0}', space=sflag, size = 0x4, scoped, tag = 'scoped memory for tpu_custom_call.1']
    #allocation10 [shape = 'u8[65536]{0}', space=vmem, size = 0x10000, scoped, tag = 'output window, operand 0']
    %12 = vsyncpa [#allocation3], 0
    %s13 = scalar_lea.sflag [#allocation3], 1
    %14 = vsyncpa %s13, 0
    %15 = vsyncpa [#allocation6], 0
    %16 = vsyncpa [#allocation9], 0
    %17 = vsyncpa [#allocation4], 0
    %s18 = scalar_lea.sflag [#allocation4], 1
    %19 = vsyncpa %s18, 0
    loop: start=0, step=1, limit=4
    $region2: #{tpu_custom_call.1} parent=1 // loop_pre_header
      _
    $region3: #{tpu_custom_call.1} parent=1 // loop_header
      %s21 = sphi 0, %s25
      %p22 = scmp.ge.s32.totalorder %s21, 4
      %s31 = sphi 0, %s33
      %s34 = sphi 0, %s31
      %s35 = sphi 0, %s34
      %s51 = sphi 0, %s35
      %s55 = sphi 0, %s55
      %s57 = sphi 0, %s55
      %s58 = sphi 0, %s57
      %s72 = sphi 0, %s58
      %s76 = sphi 0, %s76
      %s78 = sphi 0, %s76
      %s79 = sphi 0, %s78
      %s93 = sphi 0, %s79
      %s97 = sphi 0, %s97
      %s99 = sphi 0, %s97
      %s100 = sphi 0, %s99
      %s114 = sphi 0, %s100
      %s118 = sphi 0, %s118
      %s120 = sphi 0, %s118
      %s121 = sphi 0, %s120
      %s135 = sphi 0, %s121
      %s139 = sphi 0, %s139
      %s141 = sphi 0, %s139
      %s142 = sphi 0, %s141
      %s156 = sphi 0, %s142
      %s160 = sphi 0, %s160
      %s162 = sphi 0, %s160
      %s163 = sphi 0, %s162
      %s177 = sphi 0, %s163
      %s183 = sphi 0, %s185
      %s186 = sphi 0, %s183
      %s187 = sphi 0, %s186
      %s203 = sphi 0, %s187
    $region4: #{tpu_custom_call.1} parent=1 // loop_header_branch
      %24 = sbr.rel (%p22) target = $region8
    $region5: #{tpu_custom_call.1} parent=1 // loop_body
      %s26 = ssub.s32 %s21, 1
      %s27 = ssub.s32 %s21, 2
      %s28 = sadd.s32 %s21, 1
      %s29 = ssub.s32 %s21, %s28
      %p30 = scmp.eq.s32.totalorder %s29, 0
      %s32 = sadd.s32 %s31, 1
      %s33 = scalar_select %p30, %s31, %s32
      %p36 = pneg %p30
      %p37 = scmp.eq.s32.totalorder %s21, 1
      %p38 = por %p36, %p37
      %p39 = scmp.ne.s32.totalorder %s31, %s34
      %p40 = scmp.eq.s32.totalorder %s21, 0
      %p41 = por %p39, %p40
      %p42 = scmp.ne.s32.totalorder %s31, %s34
      %p43 = scmp.eq.s32.totalorder %s26, 1
      %p44 = por %p42, %p43
      %p45 = scmp.ne.s32.totalorder %s34, %s35
      %p46 = scmp.eq.s32.totalorder %s26, 0
      %p47 = por %p45, %p46
      %p48 = scmp.ne.s32.totalorder %s34, %s35
      %p49 = scmp.eq.s32.totalorder %s27, 1
      %p50 = por %p48, %p49
      %p52 = scmp.ne.s32.totalorder %s35, %s51
      %p53 = scmp.eq.s32.totalorder %s27, 0
      %p54 = por %p52, %p53
      %s56 = sadd.s32 %s55, 1
      %p59 = scmp.eq.s32.totalorder %s21, 1
      %p60 = scmp.ne.s32.totalorder %s55, %s57
      %p61 = scmp.eq.s32.totalorder %s21, 0
      %p62 = por %p60, %p61
      %p63 = scmp.ne.s32.totalorder %s55, %s57
      %p64 = scmp.eq.s32.totalorder %s26, 1
      %p65 = por %p63, %p64
      %p66 = scmp.ne.s32.totalorder %s57, %s58
      %p67 = scmp.eq.s32.totalorder %s26, 0
      %p68 = por %p66, %p67
      %p69 = scmp.ne.s32.totalorder %s57, %s58
      %p70 = scmp.eq.s32.totalorder %s27, 1
      %p71 = por %p69, %p70
      %p73 = scmp.ne.s32.totalorder %s58, %s72
      %p74 = scmp.eq.s32.totalorder %s27, 0
      %p75 = por %p73, %p74
      %s77 = sadd.s32 %s76, 1
      %p80 = scmp.eq.s32.totalorder %s21, 1
      %p81 = scmp.ne.s32.totalorder %s76, %s78
      %p82 = scmp.eq.s32.totalorder %s21, 0
      %p83 = por %p81, %p82
      %p84 = scmp.ne.s32.totalorder %s76, %s78
      %p85 = scmp.eq.s32.totalorder %s26, 1
      %p86 = por %p84, %p85
      %p87 = scmp.ne.s32.totalorder %s78, %s79
      %p88 = scmp.eq.s32.totalorder %s26, 0
      %p89 = por %p87, %p88
      %p90 = scmp.ne.s32.totalorder %s78, %s79
      %p91 = scmp.eq.s32.totalorder %s27, 1
      %p92 = por %p90, %p91
      %p94 = scmp.ne.s32.totalorder %s79, %s93
      %p95 = scmp.eq.s32.totalorder %s27, 0
      %p96 = por %p94, %p95
      %s98 = sadd.s32 %s97, 1
      %p101 = scmp.eq.s32.totalorder %s21, 1
      %p102 = scmp.ne.s32.totalorder %s97, %s99
      %p103 = scmp.eq.s32.totalorder %s21, 0
      %p104 = por %p102, %p103
      %p105 = scmp.ne.s32.totalorder %s97, %s99
      %p106 = scmp.eq.s32.totalorder %s26, 1
      %p107 = por %p105, %p106
      %p108 = scmp.ne.s32.totalorder %s99, %s100
      %p109 = scmp.eq.s32.totalorder %s26, 0
      %p110 = por %p108, %p109
      %p111 = scmp.ne.s32.totalorder %s99, %s100
      %p112 = scmp.eq.s32.totalorder %s27, 1
      %p113 = por %p111, %p112
      %p115 = scmp.ne.s32.totalorder %s100, %s114
      %p116 = scmp.eq.s32.totalorder %s27, 0
      %p117 = por %p115, %p116
      %s119 = sadd.s32 %s118, 1
      %p122 = scmp.eq.s32.totalorder %s21, 1
      %p123 = scmp.ne.s32.totalorder %s118, %s120
      %p124 = scmp.eq.s32.totalorder %s21, 0
      %p125 = por %p123, %p124
      %p126 = scmp.ne.s32.totalorder %s118, %s120
      %p127 = scmp.eq.s32.totalorder %s26, 1
      %p128 = por %p126, %p127
      %p129 = scmp.ne.s32.totalorder %s120, %s121
      %p130 = scmp.eq.s32.totalorder %s26, 0
      %p131 = por %p129, %p130
      %p132 = scmp.ne.s32.totalorder %s120, %s121
      %p133 = scmp.eq.s32.totalorder %s27, 1
      %p134 = por %p132, %p133
      %p136 = scmp.ne.s32.totalorder %s121, %s135
      %p137 = scmp.eq.s32.totalorder %s27, 0
      %p138 = por %p136, %p137
      %s140 = sadd.s32 %s139, 1
      %p143 = scmp.eq.s32.totalorder %s21, 1
      %p144 = scmp.ne.s32.totalorder %s139, %s141
      %p145 = scmp.eq.s32.totalorder %s21, 0
      %p146 = por %p144, %p145
      %p147 = scmp.ne.s32.totalorder %s139, %s141
      %p148 = scmp.eq.s32.totalorder %s26, 1
      %p149 = por %p147, %p148
      %p150 = scmp.ne.s32.totalorder %s141, %s142
      %p151 = scmp.eq.s32.totalorder %s26, 0
      %p152 = por %p150, %p151
      %p153 = scmp.ne.s32.totalorder %s141, %s142
      %p154 = scmp.eq.s32.totalorder %s27, 1
      %p155 = por %p153, %p154
      %p157 = scmp.ne.s32.totalorder %s142, %s156
      %p158 = scmp.eq.s32.totalorder %s27, 0
      %p159 = por %p157, %p158
      %s161 = sadd.s32 %s160, 1
      %p164 = scmp.eq.s32.totalorder %s21, 1
      %p165 = scmp.ne.s32.totalorder %s160, %s162
      %p166 = scmp.eq.s32.totalorder %s21, 0
      %p167 = por %p165, %p166
      %p168 = scmp.ne.s32.totalorder %s160, %s162
      %p169 = scmp.eq.s32.totalorder %s26, 1
      %p170 = por %p168, %p169
      %p171 = scmp.ne.s32.totalorder %s162, %s163
      %p172 = scmp.eq.s32.totalorder %s26, 0
      %p173 = por %p171, %p172
      %p174 = scmp.ne.s32.totalorder %s162, %s163
      %p175 = scmp.eq.s32.totalorder %s27, 1
      %p176 = por %p174, %p175
      %p178 = scmp.ne.s32.totalorder %s163, %s177
      %p179 = scmp.eq.s32.totalorder %s27, 0
      %p180 = por %p178, %p179
      %s181 = ssub.s32 %s21, %s28
      %p182 = scmp.eq.s32.totalorder %s181, 0
      %s184 = sadd.s32 %s183, 1
      %s185 = scalar_select %p182, %s183, %s184
      %p188 = pneg %p182
      %p189 = scmp.eq.s32.totalorder %s21, 1
      %p190 = por %p188, %p189
      %p191 = scmp.ne.s32.totalorder %s183, %s186
      %p192 = scmp.eq.s32.totalorder %s21, 0
      %p193 = por %p191, %p192
      %p194 = scmp.ne.s32.totalorder %s183, %s186
      %p195 = scmp.eq.s32.totalorder %s26, 1
      %p196 = por %p194, %p195
      %p197 = scmp.ne.s32.totalorder %s186, %s187
      %p198 = scmp.eq.s32.totalorder %s26, 0
      %p199 = por %p197, %p198
      %p200 = scmp.ne.s32.totalorder %s186, %s187
      %p201 = scmp.eq.s32.totalorder %s27, 1
      %p202 = por %p200, %p201
      %p204 = scmp.ne.s32.totalorder %s187, %s203
      %p205 = scmp.eq.s32.totalorder %s27, 0
      %p206 = por %p204, %p205
      %p207 = scmp.le.s32.totalorder 1, %s21
      %p208 = scmp.lt.s32.totalorder %s21, 3
      %p209 = pnand %p207, %p208
      %p210 = pneg %p209
      // Predicated region
      $region9: #{tpu_custom_call.1} parent=5 // pred_check
        _
      $region10: #{tpu_custom_call.1} parent=5 // pred_check_branch
        %212 = sbr.rel (%p209) target = $region12
      $region11: #{tpu_custom_call.1} parent=5 // pred_region
        %s213 = ssub.s32 %s21, 1
        // Predicated region
        $region13: #{tpu_custom_call.1} parent=11 // pred_check
          %p214 = pneg %p68
        $region14: #{tpu_custom_call.1} parent=11 // pred_check_branch
          %216 = sbr.rel (%p214) target = $region16
        $region15: #{tpu_custom_call.1} parent=11 // pred_region
          %s218 = ssub.s32 1024, 1024
          %219 = vsyncadd [#allocation6], %s218
          %s220 = sshll.u32 [#allocation5], 4
          %s221 = int_to_ptr.vmem [resolvable:$true] %s220
          %226 = dma.hbm_to_vmem [thread:$0]  %s1, 1024, %s221, [#allocation6], 64, 64, 4
        $region16: #{tpu_custom_call.1} parent=11 // pred_fallthru
          _
        // Predicated region
        $region17: #{tpu_custom_call.1} parent=11 // pred_check
          %p227 = pneg %p89
        $region18: #{tpu_custom_call.1} parent=11 // pred_check_branch
          %229 = sbr.rel (%p227) target = $region20
        $region19: #{tpu_custom_call.1} parent=11 // pred_region
          _
        $region20: #{tpu_custom_call.1} parent=11 // pred_fallthru
          _
        // Predicated region
        $region21: #{tpu_custom_call.1} parent=11 // pred_check
          %p230 = pneg %p110
        $region22: #{tpu_custom_call.1} parent=11 // pred_check_branch
          %232 = sbr.rel (%p230) target = $region24
        $region23: #{tpu_custom_call.1} parent=11 // pred_region
          %s234 = ssub.s32 1024, 1024
          %235 = vsyncadd [#allocation6], %s234
          %s236 = sshll.u32 [#allocation7], 4
          %s237 = int_to_ptr.vmem [resolvable:$true] %s236
          %242 = dma.hbm_to_vmem [thread:$0]  %s3, 1024, %s237, [#allocation6], 64, 64, 4
        $region24: #{tpu_custom_call.1} parent=11 // pred_fallthru
          _
        // Predicated region
        $region25: #{tpu_custom_call.1} parent=11 // pred_check
          %p243 = pneg %p131
        $region26: #{tpu_custom_call.1} parent=11 // pred_check_branch
          %245 = sbr.rel (%p243) target = $region28
        $region27: #{tpu_custom_call.1} parent=11 // pred_region
          _
        $region28: #{tpu_custom_call.1} parent=11 // pred_fallthru
          _
        // Predicated region
        $region29: #{tpu_custom_call.1} parent=11 // pred_check
          %p246 = pneg %p152
        $region30: #{tpu_custom_call.1} parent=11 // pred_check_branch
          %248 = sbr.rel (%p246) target = $region32
        $region31: #{tpu_custom_call.1} parent=11 // pred_region
          %s250 = ssub.s32 1024, 1024
          %251 = vsyncadd [#allocation9], %s250
          %s252 = sshll.u32 [#allocation8], 4
          %s253 = int_to_ptr.vmem [resolvable:$true] %s252
          %258 = dma.hbm_to_vmem [thread:$0]  %s5, 1024, %s253, [#allocation9], 64, 64, 4
        $region32: #{tpu_custom_call.1} parent=11 // pred_fallthru
          _
        // Predicated region
        $region33: #{tpu_custom_call.1} parent=11 // pred_check
          %p259 = pneg %p173
        $region34: #{tpu_custom_call.1} parent=11 // pred_check_branch
          %261 = sbr.rel (%p259) target = $region36
        $region35: #{tpu_custom_call.1} parent=11 // pred_region
          _
        $region36: #{tpu_custom_call.1} parent=11 // pred_fallthru
          _
      $region12: #{tpu_custom_call.1} parent=5 // pred_fallthru
        _
      %p262 = scmp.lt.s32.totalorder %s21, 2
      // Predicated region
      $region37: #{tpu_custom_call.1} parent=5 // pred_check
        %p263 = pneg %p262
      $region38: #{tpu_custom_call.1} parent=5 // pred_check_branch
        %265 = sbr.rel (%p263) target = $region40
      $region39: #{tpu_custom_call.1} parent=5 // pred_region
        // Predicated region
        $region41: #{tpu_custom_call.1} parent=39 // pred_check
          %p266 = pneg %p41
        $region42: #{tpu_custom_call.1} parent=39 // pred_check_branch
          %268 = sbr.rel (%p266) target = $region44
        $region43: #{tpu_custom_call.1} parent=39 // pred_region
          %s269 = sand.u32 %s31, 1
          %s270 = scalar_lea.sflag [#allocation3], %s269
          %s271 = sand.u32 %s31, 1
          %s272 = smul.addr %s271, 64
          %s273 = scalar_lea.vmem [#allocation2], %s272
          %s274 = smul.u32 16, %s21
          %s276 = ssub.s32 1024, 1024
          %277 = vsyncadd %s270, %s276
          %s278 = smul.addr %s274, 64
          %s279 = scalar_lea.hbm %s0, %s278
          %s280 = sshll.u32 %s273, 4
          %s281 = int_to_ptr.vmem [resolvable:$true] %s280
          %286 = dma.hbm_to_vmem [thread:$0]  %s279, 1024, %s281, %s270, 64, 64, 4
        $region44: #{tpu_custom_call.1} parent=39 // pred_fallthru
          _
      $region40: #{tpu_custom_call.1} parent=5 // pred_fallthru
        _
      %p287 = scmp.le.s32.totalorder 1, %s21
      %p288 = scmp.lt.s32.totalorder %s21, 3
      %p289 = pnand %p287, %p288
      %p290 = pneg %p289
      // Predicated region
      $region45: #{tpu_custom_call.1} parent=5 // pred_check
        _
      $region46: #{tpu_custom_call.1} parent=5 // pred_check_branch
        %292 = sbr.rel (%p289) target = $region48
      $region47: #{tpu_custom_call.1} parent=5 // pred_region
        %s293 = ssub.s32 %s21, 1
        %s294 = sand.u32 %s34, 1
        %s295 = scalar_lea.sflag [#allocation3], %s294
        %s296 = sand.u32 %s34, 1
        %s297 = smul.addr %s296, 64
        %s298 = scalar_lea.vmem [#allocation2], %s297
        // Predicated region
        $region49: #{tpu_custom_call.1} parent=47 // pred_check
          %p299 = pneg %p47
        $region50: #{tpu_custom_call.1} parent=47 // pred_check_branch
          %301 = sbr.rel (%p299) target = $region52
        $region51: #{tpu_custom_call.1} parent=47 // pred_region
          %302 = dma.done %s295, 1024
        $region52: #{tpu_custom_call.1} parent=47 // pred_fallthru
          _
        // Predicated region
        $region53: #{tpu_custom_call.1} parent=47 // pred_check
          %p303 = pneg %p68
        $region54: #{tpu_custom_call.1} parent=47 // pred_check_branch
          %305 = sbr.rel (%p303) target = $region56
        $region55: #{tpu_custom_call.1} parent=47 // pred_region
          %306 = dma.done [#allocation6], 1024
        $region56: #{tpu_custom_call.1} parent=47 // pred_fallthru
          _
        // Predicated region
        $region57: #{tpu_custom_call.1} parent=47 // pred_check
          %p307 = pneg %p110
        $region58: #{tpu_custom_call.1} parent=47 // pred_check_branch
          %309 = sbr.rel (%p307) target = $region60
        $region59: #{tpu_custom_call.1} parent=47 // pred_region
          %310 = dma.done [#allocation6], 1024
        $region60: #{tpu_custom_call.1} parent=47 // pred_fallthru
          _
        // Predicated region
        $region61: #{tpu_custom_call.1} parent=47 // pred_check
          %p311 = pneg %p152
        $region62: #{tpu_custom_call.1} parent=47 // pred_check_branch
          %313 = sbr.rel (%p311) target = $region64
        $region63: #{tpu_custom_call.1} parent=47 // pred_region
          %314 = dma.done [#allocation9], 1024
        $region64: #{tpu_custom_call.1} parent=47 // pred_fallthru
          _
        %s315 = sand.u32 %s34, 1
        %s316 = scalar_lea.sflag [#allocation3], %s315
        %s317 = sand.u32 %s34, 1
        %s318 = smul.addr %s317, 64
        %s319 = scalar_lea.vmem [#allocation2], %s318
        %p320 = pneg %p47
        %p321 = pneg %p44
        %p322 = pneg %p68
        %p323 = pneg %p65
        %p324 = pneg %p89
        %p325 = pneg %p86
        %p326 = pneg %p110
        %p327 = pneg %p107
        %p328 = pneg %p131
        %p329 = pneg %p128
        %p330 = pneg %p152
        %p331 = pneg %p149
        %p332 = pneg %p173
        %p333 = pneg %p170
        %p334 = pneg %p199
        %p335 = pneg %p196
        %s336 = sand.u32 %s186, 1
        %s337 = scalar_lea.sflag [#allocation4], %s336
        %s338 = sand.u32 %s186, 1
        %s339 = smul.addr %s338, 64
        %s340 = scalar_lea.vmem [#allocation10], %s339
        %s341 = smul.u32 16, %s26
        %s342 = smul.u32 16, %s26
        %v344 = vld [vmem:[%s2] sm:$0x1]
        %v345 = vld [vmem:[%s4] sm:$0x1]
        %v346 = vld [vmem:[%s6] sm:$0x1]
        %v347 = vld [vmem:[%s298] sm:$0xf]
        %v348 = vld [vmem:[%s298 + $0x4] sm:$0xf]
        %v349 = vld [vmem:[%s298 + $0x8] sm:$0xf]
        %v350 = vld [vmem:[%s298 + $0xc] sm:$0xf]
        %v351 = vld [vmem:[%s298 + $0x10] sm:$0xf]
        %v352 = vld [vmem:[%s298 + $0x14] sm:$0xf]
        %v353 = vld [vmem:[%s298 + $0x18] sm:$0xf]
        %v354 = vld [vmem:[%s298 + $0x1c] sm:$0xf]
        %v355 = vld [vmem:[%s298 + $0x20] sm:$0xf]
        %v356 = vld [vmem:[%s298 + $0x24] sm:$0xf]
        %v357 = vld [vmem:[%s298 + $0x28] sm:$0xf]
        %v358 = vld [vmem:[%s298 + $0x2c] sm:$0xf]
        %v359 = vld [vmem:[%s298 + $0x30] sm:$0xf]
        %v360 = vld [vmem:[%s298 + $0x34] sm:$0xf]
        %v361 = vld [vmem:[%s298 + $0x38] sm:$0xf]
        %v362 = vld [vmem:[%s298 + $0x3c] sm:$0xf]
        %v363 = vld [vmem:[#allocation5] sm:$0xf]
        %v364 = vld [vmem:[#allocation5 + $0x4] sm:$0xf]
        %v365 = vld [vmem:[#allocation5 + $0x8] sm:$0xf]
        %v366 = vld [vmem:[#allocation5 + $0xc] sm:$0xf]
        %v367 = vld [vmem:[#allocation5 + $0x10] sm:$0xf]
        %v368 = vld [vmem:[#allocation5 + $0x14] sm:$0xf]
        %v369 = vld [vmem:[#allocation5 + $0x18] sm:$0xf]
        %v370 = vld [vmem:[#allocation5 + $0x1c] sm:$0xf]
        %v371 = vld [vmem:[#allocation5 + $0x20] sm:$0xf]
        %v372 = vld [vmem:[#allocation5 + $0x24] sm:$0xf]
        %v373 = vld [vmem:[#allocation5 + $0x28] sm:$0xf]
        %v374 = vld [vmem:[#allocation5 + $0x2c] sm:$0xf]
        %v375 = vld [vmem:[#allocation5 + $0x30] sm:$0xf]
        %v376 = vld [vmem:[#allocation5 + $0x34] sm:$0xf]
        %v377 = vld [vmem:[#allocation5 + $0x38] sm:$0xf]
        %v378 = vld [vmem:[#allocation5 + $0x3c] sm:$0xf]
        %v380 = vlaneseq
        %v381 = vshrl.u32 %v380, 7
        %v382 = vsub.s32 0, %v381
        %v383 = vrot.slane %v344, %v382
        %v401 = vunpack.c.l.b16 %v347
        %v402 = vunpack.c.l.b16 %v348
        %v403 = vunpack.c.l.b16 %v349
        %v404 = vunpack.c.l.b16 %v350
        %v405 = vunpack.c.l.b16 %v351
        %v406 = vunpack.c.l.b16 %v352
        %v407 = vunpack.c.l.b16 %v353
        %v408 = vunpack.c.l.b16 %v354
        %v409 = vunpack.c.l.b16 %v355
        %v410 = vunpack.c.l.b16 %v356
        %v411 = vunpack.c.l.b16 %v357
        %v412 = vunpack.c.l.b16 %v358
        %v413 = vunpack.c.l.b16 %v359
        %v414 = vunpack.c.l.b16 %v360
        %v415 = vunpack.c.l.b16 %v361
        %v416 = vunpack.c.l.b16 %v362
        %v417 = vpack.c.b16 %v402, %v401
        %v418 = vpack.c.b16 %v404, %v403
        %v419 = vpack.c.b16 %v406, %v405
        %v420 = vpack.c.b16 %v408, %v407
        %v421 = vpack.c.b16 %v410, %v409
        %v422 = vpack.c.b16 %v412, %v411
        %v423 = vpack.c.b16 %v414, %v413
        %v424 = vpack.c.b16 %v416, %v415
        %v449 = vunpack.c.l.b16 %v363
        %v450 = vunpack.c.l.b16 %v364
        %v451 = vunpack.c.l.b16 %v365
        %v452 = vunpack.c.l.b16 %v366
        %v453 = vunpack.c.l.b16 %v367
        %v454 = vunpack.c.l.b16 %v368
        %v455 = vunpack.c.l.b16 %v369
        %v456 = vunpack.c.l.b16 %v370
        %v457 = vunpack.c.l.b16 %v371
        %v458 = vunpack.c.l.b16 %v372
        %v459 = vunpack.c.l.b16 %v373
        %v460 = vunpack.c.l.b16 %v374
        %v461 = vunpack.c.l.b16 %v375
        %v462 = vunpack.c.l.b16 %v376
        %v463 = vunpack.c.l.b16 %v377
        %v464 = vunpack.c.l.b16 %v378
        %v465 = vpack.c.b16 %v450, %v449
        %v466 = vpack.c.b16 %v452, %v451
        %v467 = vpack.c.b16 %v454, %v453
        %v468 = vpack.c.b16 %v456, %v455
        %v469 = vpack.c.b16 %v458, %v457
        %v470 = vpack.c.b16 %v460, %v459
        %v471 = vpack.c.b16 %v462, %v461
        %v472 = vpack.c.b16 %v464, %v463
        %481 = vmatprep.subr.bf16.mxu0 0
        %482 = vmatpush1.bf16.msra.mxu0 %v465
        %483 = vmatprep.subr.bf16.mxu0 0
        %484 = vmatpush1.bf16.msra.mxu0 %v466
        %485 = vmatprep.subr.bf16.mxu0 0
        %486 = vmatpush1.bf16.msra.mxu0 %v467
        %487 = vmatprep.subr.bf16.mxu0 0
        %488 = vmatpush1.bf16.msra.mxu0 %v468
        %489 = vmatprep.subr.bf16.mxu0 0
        %490 = vmatpush1.bf16.msra.mxu0 %v469
        %491 = vmatprep.subr.bf16.mxu0 0
        %492 = vmatpush1.bf16.msra.mxu0 %v470
        %493 = vmatprep.subr.bf16.mxu0 0
        %494 = vmatpush1.bf16.msra.mxu0 %v471
        %495 = vmatprep.subr.bf16.mxu0 0
        %496 = vmatpush1.bf16.msra.mxu0 %v472
        %497 = vmatprep.subr.bf16.mxu0 0
        %498 = vmatpush1.bf16.msra.mxu0 0
        %499 = vmatprep.subr.bf16.mxu0 0
        %500 = vmatpush1.bf16.msra.mxu0 0
        %501 = vmatprep.subr.bf16.mxu0 0
        %502 = vmatpush1.bf16.msra.mxu0 0
        %503 = vmatprep.subr.bf16.mxu0 0
        %504 = vmatpush1.bf16.msra.mxu0 0
        %505 = vmatprep.subr.bf16.mxu0 0
        %506 = vmatpush1.bf16.msra.mxu0 0
        %507 = vmatprep.subr.bf16.mxu0 0
        %508 = vmatpush1.bf16.msra.mxu0 0
        %509 = vmatprep.subr.bf16.mxu0 0
        %510 = vmatpush1.bf16.msra.mxu0 0
        %511 = vmatprep.subr.bf16.mxu0 0
        %512 = vmatpush1.bf16.msra.mxu0 0
        %513 = vmatprep.mubr.bf16.mxu0 0
        %514 = vmatmul.mubr.bf16.gmra.mrb[0].mxu0 %v417
        %v515 = vpop.f32.mrb[0].mxu0
        %v516 = vadd.f32 %v383, %v515
        %v517 = vpop.f32.mrb[0].mxu0
        %v518 = vpop.f32.mrb[0].mxu0
        %v519 = vadd.f32 %v383, %v518
        %v520 = vpop.f32.mrb[0].mxu0
        %521 = vmatprep.mubr.bf16.mxu0 0
        %522 = vmatmul.mubr.bf16.gmra.mrb[0].mxu0 %v418
        %v523 = vpop.f32.mrb[0].mxu0
        %v524 = vadd.f32 %v383, %v523
        %v525 = vpop.f32.mrb[0].mxu0
        %v526 = vpop.f32.mrb[0].mxu0
        %v527 = vadd.f32 %v383, %v526
        %v528 = vpop.f32.mrb[0].mxu0
        %529 = vmatprep.mubr.bf16.mxu0 0
        %530 = vmatmul.mubr.bf16.gmra.mrb[0].mxu0 %v419
        %v531 = vpop.f32.mrb[0].mxu0
        %v532 = vadd.f32 %v383, %v531
        %v533 = vpop.f32.mrb[0].mxu0
        %v534 = vpop.f32.mrb[0].mxu0
        %v535 = vadd.f32 %v383, %v534
        %v536 = vpop.f32.mrb[0].mxu0
        %537 = vmatprep.mubr.bf16.mxu0 0
        %538 = vmatmul.mubr.bf16.gmra.mrb[0].mxu0 %v420
        %v539 = vpop.f32.mrb[0].mxu0
        %v540 = vadd.f32 %v383, %v539
        %v541 = vpop.f32.mrb[0].mxu0
        %v542 = vpop.f32.mrb[0].mxu0
        %v543 = vadd.f32 %v383, %v542
        %v544 = vpop.f32.mrb[0].mxu0
        %545 = vmatprep.mubr.bf16.mxu0 0
        %546 = vmatmul.mubr.bf16.gmra.mrb[0].mxu0 %v421
        %v547 = vpop.f32.mrb[0].mxu0
        %v548 = vadd.f32 %v383, %v547
        %v549 = vpop.f32.mrb[0].mxu0
        %v550 = vpop.f32.mrb[0].mxu0
        %v551 = vadd.f32 %v383, %v550
        %v552 = vpop.f32.mrb[0].mxu0
        %553 = vmatprep.mubr.bf16.mxu0 0
        %554 = vmatmul.mubr.bf16.gmra.mrb[0].mxu0 %v422
        %v555 = vpop.f32.mrb[0].mxu0
        %v556 = vadd.f32 %v383, %v555
        %v557 = vpop.f32.mrb[0].mxu0
        %v558 = vpop.f32.mrb[0].mxu0
        %v559 = vadd.f32 %v383, %v558
        %v560 = vpop.f32.mrb[0].mxu0
        %561 = vmatprep.mubr.bf16.mxu0 0
        %562 = vmatmul.mubr.bf16.gmra.mrb[0].mxu0 %v423
        %v563 = vpop.f32.mrb[0].mxu0
        %v564 = vadd.f32 %v383, %v563
        %v565 = vpop.f32.mrb[0].mxu0
        %v566 = vpop.f32.mrb[0].mxu0
        %v567 = vadd.f32 %v383, %v566
        %v568 = vpop.f32.mrb[0].mxu0
        %569 = vmatprep.mubr.bf16.mxu0 0
        %570 = vmatmul.mubr.bf16.gmra.mrb[0].mxu0 %v424
        %v571 = vpop.f32.mrb[0].mxu0
        %v572 = vadd.f32 %v383, %v571
        %v573 = vpop.f32.mrb[0].mxu0
        %v574 = vpop.f32.mrb[0].mxu0
        %v575 = vadd.f32 %v383, %v574
        %v576 = vpop.f32.mrb[0].mxu0
        %577 = vdwg.mxu0
        %v578 = vmax.f32 %v516, 0.0
        %v579 = vmax.f32 %v519, 0.0
        %v580 = vmax.f32 %v524, 0.0
        %v581 = vmax.f32 %v527, 0.0
        %v582 = vmax.f32 %v532, 0.0
        %v583 = vmax.f32 %v535, 0.0
        %v584 = vmax.f32 %v540, 0.0
        %v585 = vmax.f32 %v543, 0.0
        %v586 = vmax.f32 %v548, 0.0
        %v587 = vmax.f32 %v551, 0.0
        %v588 = vmax.f32 %v556, 0.0
        %v589 = vmax.f32 %v559, 0.0
        %v590 = vmax.f32 %v564, 0.0
        %v591 = vmax.f32 %v567, 0.0
        %v592 = vmax.f32 %v572, 0.0
        %v593 = vmax.f32 %v575, 0.0
        %v594 = vpack.c.bf16 %v579, %v578
        %v595 = vpack.c.bf16 %v581, %v580
        %v596 = vpack.c.bf16 %v583, %v582
        %v597 = vpack.c.bf16 %v585, %v584
        %v598 = vpack.c.bf16 %v587, %v586
        %v599 = vpack.c.bf16 %v589, %v588
        %v600 = vpack.c.bf16 %v591, %v590
        %v601 = vpack.c.bf16 %v593, %v592
        %v602 = vld [vmem:[#allocation7] sm:$0xf]
        %v603 = vld [vmem:[#allocation7 + $0x4] sm:$0xf]
        %v604 = vld [vmem:[#allocation7 + $0x8] sm:$0xf]
        %v605 = vld [vmem:[#allocation7 + $0xc] sm:$0xf]
        %v606 = vld [vmem:[#allocation7 + $0x10] sm:$0xf]
        %v607 = vld [vmem:[#allocation7 + $0x14] sm:$0xf]
        %v608 = vld [vmem:[#allocation7 + $0x18] sm:$0xf]
        %v609 = vld [vmem:[#allocation7 + $0x1c] sm:$0xf]
        %v610 = vld [vmem:[#allocation7 + $0x20] sm:$0xf]
        %v611 = vld [vmem:[#allocation7 + $0x24] sm:$0xf]
        %v612 = vld [vmem:[#allocation7 + $0x28] sm:$0xf]
        %v613 = vld [vmem:[#allocation7 + $0x2c] sm:$0xf]
        %v614 = vld [vmem:[#allocation7 + $0x30] sm:$0xf]
        %v615 = vld [vmem:[#allocation7 + $0x34] sm:$0xf]
        %v616 = vld [vmem:[#allocation7 + $0x38] sm:$0xf]
        %v617 = vld [vmem:[#allocation7 + $0x3c] sm:$0xf]
        %v619 = vlaneseq
        %v620 = vshrl.u32 %v619, 7
        %v621 = vsub.s32 0, %v620
        %v622 = vrot.slane %v345, %v621
        %v640 = vunpack.c.l.b16 %v602
        %v641 = vunpack.c.l.b16 %v603
        %v642 = vunpack.c.l.b16 %v604
        %v643 = vunpack.c.l.b16 %v605
        %v644 = vunpack.c.l.b16 %v606
        %v645 = vunpack.c.l.b16 %v607
        %v646 = vunpack.c.l.b16 %v608
        %v647 = vunpack.c.l.b16 %v609
        %v648 = vunpack.c.l.b16 %v610
        %v649 = vunpack.c.l.b16 %v611
        %v650 = vunpack.c.l.b16 %v612
        %v651 = vunpack.c.l.b16 %v613
        %v652 = vunpack.c.l.b16 %v614
        %v653 = vunpack.c.l.b16 %v615
        %v654 = vunpack.c.l.b16 %v616
        %v655 = vunpack.c.l.b16 %v617
        %v656 = vpack.c.b16 %v641, %v640
        %v657 = vpack.c.b16 %v643, %v642
        %v658 = vpack.c.b16 %v645, %v644
        %v659 = vpack.c.b16 %v647, %v646
        %v660 = vpack.c.b16 %v649, %v648
        %v661 = vpack.c.b16 %v651, %v650
        %v662 = vpack.c.b16 %v653, %v652
        %v663 = vpack.c.b16 %v655, %v654
        %672 = vmatprep.subr.bf16.mxu0 0
        %673 = vmatpush1.bf16.msra.mxu0 %v656
        %674 = vmatprep.subr.bf16.mxu0 0
        %675 = vmatpush1.bf16.msra.mxu0 %v657
        %676 = vmatprep.subr.bf16.mxu0 0
        %677 = vmatpush1.bf16.msra.mxu0 %v658
        %678 = vmatprep.subr.bf16.mxu0 0
        %679 = vmatpush1.bf16.msra.mxu0 %v659
        %680 = vmatprep.subr.bf16.mxu0 0
        %681 = vmatpush1.bf16.msra.mxu0 %v660
        %682 = vmatprep.subr.bf16.mxu0 0
        %683 = vmatpush1.bf16.msra.mxu0 %v661
        %684 = vmatprep.subr.bf16.mxu0 0
        %685 = vmatpush1.bf16.msra.mxu0 %v662
        %686 = vmatprep.subr.bf16.mxu0 0
        %687 = vmatpush1.bf16.msra.mxu0 %v663
        %688 = vmatprep.subr.bf16.mxu0 0
        %689 = vmatpush1.bf16.msra.mxu0 0
        %690 = vmatprep.subr.bf16.mxu0 0
        %691 = vmatpush1.bf16.msra.mxu0 0
        %692 = vmatprep.subr.bf16.mxu0 0
        %693 = vmatpush1.bf16.msra.mxu0 0
        %694 = vmatprep.subr.bf16.mxu0 0
        %695 = vmatpush1.bf16.msra.mxu0 0
        %696 = vmatprep.subr.bf16.mxu0 0
        %697 = vmatpush1.bf16.msra.mxu0 0
        %698 = vmatprep.subr.bf16.mxu0 0
        %699 = vmatpush1.bf16.msra.mxu0 0
        %700 = vmatprep.subr.bf16.mxu0 0
        %701 = vmatpush1.bf16.msra.mxu0 0
        %702 = vmatprep.subr.bf16.mxu0 0
        %703 = vmatpush1.bf16.msra.mxu0 0
        %704 = vmatprep.mubr.bf16.mxu0 0
        %705 = vmatmul.mubr.bf16.gmra.mrb[0].mxu0 %v594
        %v706 = vpop.f32.mrb[0].mxu0
        %v707 = vadd.f32 %v622, %v706
        %v708 = vpop.f32.mrb[0].mxu0
        %v709 = vpop.f32.mrb[0].mxu0
        %v710 = vadd.f32 %v622, %v709
        %v711 = vpop.f32.mrb[0].mxu0
        %712 = vmatprep.mubr.bf16.mxu0 0
        %713 = vmatmul.mubr.bf16.gmra.mrb[0].mxu0 %v595
        %v714 = vpop.f32.mrb[0].mxu0
        %v715 = vadd.f32 %v622, %v714
        %v716 = vpop.f32.mrb[0].mxu0
        %v717 = vpop.f32.mrb[0].mxu0
        %v718 = vadd.f32 %v622, %v717
        %v719 = vpop.f32.mrb[0].mxu0
        %720 = vmatprep.mubr.bf16.mxu0 0
        %721 = vmatmul.mubr.bf16.gmra.mrb[0].mxu0 %v596
        %v722 = vpop.f32.mrb[0].mxu0
        %v723 = vadd.f32 %v622, %v722
        %v724 = vpop.f32.mrb[0].mxu0
        %v725 = vpop.f32.mrb[0].mxu0
        %v726 = vadd.f32 %v622, %v725
        %v727 = vpop.f32.mrb[0].mxu0
        %728 = vmatprep.mubr.bf16.mxu0 0
        %729 = vmatmul.mubr.bf16.gmra.mrb[0].mxu0 %v597
        %v730 = vpop.f32.mrb[0].mxu0
        %v731 = vadd.f32 %v622, %v730
        %v732 = vpop.f32.mrb[0].mxu0
        %v733 = vpop.f32.mrb[0].mxu0
        %v734 = vadd.f32 %v622, %v733
        %v735 = vpop.f32.mrb[0].mxu0
        %736 = vmatprep.mubr.bf16.mxu0 0
        %737 = vmatmul.mubr.bf16.gmra.mrb[0].mxu0 %v598
        %v738 = vpop.f32.mrb[0].mxu0
        %v739 = vadd.f32 %v622, %v738
        %v740 = vpop.f32.mrb[0].mxu0
        %v741 = vpop.f32.mrb[0].mxu0
        %v742 = vadd.f32 %v622, %v741
        %v743 = vpop.f32.mrb[0].mxu0
        %744 = vmatprep.mubr.bf16.mxu0 0
        %745 = vmatmul.mubr.bf16.gmra.mrb[0].mxu0 %v599
        %v746 = vpop.f32.mrb[0].mxu0
        %v747 = vadd.f32 %v622, %v746
        %v748 = vpop.f32.mrb[0].mxu0
        %v749 = vpop.f32.mrb[0].mxu0
        %v750 = vadd.f32 %v622, %v749
        %v751 = vpop.f32.mrb[0].mxu0
        %752 = vmatprep.mubr.bf16.mxu0 0
        %753 = vmatmul.mubr.bf16.gmra.mrb[0].mxu0 %v600
        %v754 = vpop.f32.mrb[0].mxu0
        %v755 = vadd.f32 %v622, %v754
        %v756 = vpop.f32.mrb[0].mxu0
        %v757 = vpop.f32.mrb[0].mxu0
        %v758 = vadd.f32 %v622, %v757
        %v759 = vpop.f32.mrb[0].mxu0
        %760 = vmatprep.mubr.bf16.mxu0 0
        %761 = vmatmul.mubr.bf16.gmra.mrb[0].mxu0 %v601
        %v762 = vpop.f32.mrb[0].mxu0
        %v763 = vadd.f32 %v622, %v762
        %v764 = vpop.f32.mrb[0].mxu0
        %v765 = vpop.f32.mrb[0].mxu0
        %v766 = vadd.f32 %v622, %v765
        %v767 = vpop.f32.mrb[0].mxu0
        %768 = vdwg.mxu0
        %v769 = vmax.f32 %v707, 0.0
        %v770 = vmax.f32 %v710, 0.0
        %v771 = vmax.f32 %v715, 0.0
        %v772 = vmax.f32 %v718, 0.0
        %v773 = vmax.f32 %v723, 0.0
        %v774 = vmax.f32 %v726, 0.0
        %v775 = vmax.f32 %v731, 0.0
        %v776 = vmax.f32 %v734, 0.0
        %v777 = vmax.f32 %v739, 0.0
        %v778 = vmax.f32 %v742, 0.0
        %v779 = vmax.f32 %v747, 0.0
        %v780 = vmax.f32 %v750, 0.0
        %v781 = vmax.f32 %v755, 0.0
        %v782 = vmax.f32 %v758, 0.0
        %v783 = vmax.f32 %v763, 0.0
        %v784 = vmax.f32 %v766, 0.0
        %v785 = vpack.c.bf16 %v770, %v769
        %v786 = vpack.c.bf16 %v772, %v771
        %v787 = vpack.c.bf16 %v774, %v773
        %v788 = vpack.c.bf16 %v776, %v775
        %v789 = vpack.c.bf16 %v778, %v777
        %v790 = vpack.c.bf16 %v780, %v779
        %v791 = vpack.c.bf16 %v782, %v781
        %v792 = vpack.c.bf16 %v784, %v783
        %v793 = vld [vmem:[#allocation8] sm:$0xf]
        %v794 = vld [vmem:[#allocation8 + $0x4] sm:$0xf]
        %v795 = vld [vmem:[#allocation8 + $0x8] sm:$0xf]
        %v796 = vld [vmem:[#allocation8 + $0xc] sm:$0xf]
        %v797 = vld [vmem:[#allocation8 + $0x10] sm:$0xf]
        %v798 = vld [vmem:[#allocation8 + $0x14] sm:$0xf]
        %v799 = vld [vmem:[#allocation8 + $0x18] sm:$0xf]
        %v800 = vld [vmem:[#allocation8 + $0x1c] sm:$0xf]
        %v801 = vld [vmem:[#allocation8 + $0x20] sm:$0xf]
        %v802 = vld [vmem:[#allocation8 + $0x24] sm:$0xf]
        %v803 = vld [vmem:[#allocation8 + $0x28] sm:$0xf]
        %v804 = vld [vmem:[#allocation8 + $0x2c] sm:$0xf]
        %v805 = vld [vmem:[#allocation8 + $0x30] sm:$0xf]
        %v806 = vld [vmem:[#allocation8 + $0x34] sm:$0xf]
        %v807 = vld [vmem:[#allocation8 + $0x38] sm:$0xf]
        %v808 = vld [vmem:[#allocation8 + $0x3c] sm:$0xf]
        %v810 = vlaneseq
        %v811 = vshrl.u32 %v810, 7
        %v812 = vsub.s32 0, %v811
        %v813 = vrot.slane %v346, %v812
        %v831 = vunpack.c.l.b16 %v793
        %v832 = vunpack.c.l.b16 %v794
        %v833 = vunpack.c.l.b16 %v795
        %v834 = vunpack.c.l.b16 %v796
        %v835 = vunpack.c.l.b16 %v797
        %v836 = vunpack.c.l.b16 %v798
        %v837 = vunpack.c.l.b16 %v799
        %v838 = vunpack.c.l.b16 %v800
        %v839 = vunpack.c.l.b16 %v801
        %v840 = vunpack.c.l.b16 %v802
        %v841 = vunpack.c.l.b16 %v803
        %v842 = vunpack.c.l.b16 %v804
        %v843 = vunpack.c.l.b16 %v805
        %v844 = vunpack.c.l.b16 %v806
        %v845 = vunpack.c.l.b16 %v807
        %v846 = vunpack.c.l.b16 %v808
        %v847 = vpack.c.b16 %v832, %v831
        %v848 = vpack.c.b16 %v834, %v833
        %v849 = vpack.c.b16 %v836, %v835
        %v850 = vpack.c.b16 %v838, %v837
        %v851 = vpack.c.b16 %v840, %v839
        %v852 = vpack.c.b16 %v842, %v841
        %v853 = vpack.c.b16 %v844, %v843
        %v854 = vpack.c.b16 %v846, %v845
        %863 = vmatprep.subr.bf16.mxu0 0
        %864 = vmatpush1.bf16.msra.mxu0 %v847
        %865 = vmatprep.subr.bf16.mxu0 0
        %866 = vmatpush1.bf16.msra.mxu0 %v848
        %867 = vmatprep.subr.bf16.mxu0 0
        %868 = vmatpush1.bf16.msra.mxu0 %v849
        %869 = vmatprep.subr.bf16.mxu0 0
        %870 = vmatpush1.bf16.msra.mxu0 %v850
        %871 = vmatprep.subr.bf16.mxu0 0
        %872 = vmatpush1.bf16.msra.mxu0 %v851
        %873 = vmatprep.subr.bf16.mxu0 0
        %874 = vmatpush1.bf16.msra.mxu0 %v852
        %875 = vmatprep.subr.bf16.mxu0 0
        %876 = vmatpush1.bf16.msra.mxu0 %v853
        %877 = vmatprep.subr.bf16.mxu0 0
        %878 = vmatpush1.bf16.msra.mxu0 %v854
        %879 = vmatprep.subr.bf16.mxu0 0
        %880 = vmatpush1.bf16.msra.mxu0 0
        %881 = vmatprep.subr.bf16.mxu0 0
        %882 = vmatpush1.bf16.msra.mxu0 0
        %883 = vmatprep.subr.bf16.mxu0 0
        %884 = vmatpush1.bf16.msra.mxu0 0
        %885 = vmatprep.subr.bf16.mxu0 0
        %886 = vmatpush1.bf16.msra.mxu0 0
        %887 = vmatprep.subr.bf16.mxu0 0
        %888 = vmatpush1.bf16.msra.mxu0 0
        %889 = vmatprep.subr.bf16.mxu0 0
        %890 = vmatpush1.bf16.msra.mxu0 0
        %891 = vmatprep.subr.bf16.mxu0 0
        %892 = vmatpush1.bf16.msra.mxu0 0
        %893 = vmatprep.subr.bf16.mxu0 0
        %894 = vmatpush1.bf16.msra.mxu0 0
        %895 = vmatprep.mubr.bf16.mxu0 0
        %896 = vmatmul.mubr.bf16.gmra.mrb[0].mxu0 %v785
        %v897 = vpop.f32.mrb[0].mxu0
        %v898 = vadd.f32 %v813, %v897
        %v899 = vpop.f32.mrb[0].mxu0
        %v900 = vpop.f32.mrb[0].mxu0
        %v901 = vadd.f32 %v813, %v900
        %v902 = vpop.f32.mrb[0].mxu0
        %903 = vmatprep.mubr.bf16.mxu0 0
        %904 = vmatmul.mubr.bf16.gmra.mrb[0].mxu0 %v786
        %v905 = vpop.f32.mrb[0].mxu0
        %v906 = vadd.f32 %v813, %v905
        %v907 = vpop.f32.mrb[0].mxu0
        %v908 = vpop.f32.mrb[0].mxu0
        %v909 = vadd.f32 %v813, %v908
        %v910 = vpop.f32.mrb[0].mxu0
        %911 = vmatprep.mubr.bf16.mxu0 0
        %912 = vmatmul.mubr.bf16.gmra.mrb[0].mxu0 %v787
        %v913 = vpop.f32.mrb[0].mxu0
        %v914 = vadd.f32 %v813, %v913
        %v915 = vpop.f32.mrb[0].mxu0
        %v916 = vpop.f32.mrb[0].mxu0
        %v917 = vadd.f32 %v813, %v916
        %v918 = vpop.f32.mrb[0].mxu0
        %919 = vmatprep.mubr.bf16.mxu0 0
        %920 = vmatmul.mubr.bf16.gmra.mrb[0].mxu0 %v788
        %v921 = vpop.f32.mrb[0].mxu0
        %v922 = vadd.f32 %v813, %v921
        %v923 = vpop.f32.mrb[0].mxu0
        %v924 = vpop.f32.mrb[0].mxu0
        %v925 = vadd.f32 %v813, %v924
        %v926 = vpop.f32.mrb[0].mxu0
        %927 = vmatprep.mubr.bf16.mxu0 0
        %928 = vmatmul.mubr.bf16.gmra.mrb[0].mxu0 %v789
        %v929 = vpop.f32.mrb[0].mxu0
        %v930 = vadd.f32 %v813, %v929
        %v931 = vpop.f32.mrb[0].mxu0
        %v932 = vpop.f32.mrb[0].mxu0
        %v933 = vadd.f32 %v813, %v932
        %v934 = vpop.f32.mrb[0].mxu0
        %935 = vmatprep.mubr.bf16.mxu0 0
        %936 = vmatmul.mubr.bf16.gmra.mrb[0].mxu0 %v790
        %v937 = vpop.f32.mrb[0].mxu0
        %v938 = vadd.f32 %v813, %v937
        %v939 = vpop.f32.mrb[0].mxu0
        %v940 = vpop.f32.mrb[0].mxu0
        %v941 = vadd.f32 %v813, %v940
        %v942 = vpop.f32.mrb[0].mxu0
        %943 = vmatprep.mubr.bf16.mxu0 0
        %944 = vmatmul.mubr.bf16.gmra.mrb[0].mxu0 %v791
        %v945 = vpop.f32.mrb[0].mxu0
        %v946 = vadd.f32 %v813, %v945
        %v947 = vpop.f32.mrb[0].mxu0
        %v948 = vpop.f32.mrb[0].mxu0
        %v949 = vadd.f32 %v813, %v948
        %v950 = vpop.f32.mrb[0].mxu0
        %951 = vmatprep.mubr.bf16.mxu0 0
        %952 = vmatmul.mubr.bf16.gmra.mrb[0].mxu0 %v792
        %v953 = vpop.f32.mrb[0].mxu0
        %v954 = vadd.f32 %v813, %v953
        %v955 = vpop.f32.mrb[0].mxu0
        %v956 = vpop.f32.mrb[0].mxu0
        %v957 = vadd.f32 %v813, %v956
        %v958 = vpop.f32.mrb[0].mxu0
        %959 = vdwg.mxu0
        %v960 = vpack.c.bf16 %v901, %v898
        %v961 = vpack.c.bf16 %v909, %v906
        %v962 = vpack.c.bf16 %v917, %v914
        %v963 = vpack.c.bf16 %v925, %v922
        %v964 = vpack.c.bf16 %v933, %v930
        %v965 = vpack.c.bf16 %v941, %v938
        %v966 = vpack.c.bf16 %v949, %v946
        %v967 = vpack.c.bf16 %v957, %v954
        %v976 = vunpack.c.l.b16 %v960
        %v977 = vunpack.c.h.b16 %v960
        %v978 = vunpack.c.l.b16 %v961
        %v979 = vunpack.c.h.b16 %v961
        %v980 = vunpack.c.l.b16 %v962
        %v981 = vunpack.c.h.b16 %v962
        %v982 = vunpack.c.l.b16 %v963
        %v983 = vunpack.c.h.b16 %v963
        %v984 = vunpack.c.l.b16 %v964
        %v985 = vunpack.c.h.b16 %v964
        %v986 = vunpack.c.l.b16 %v965
        %v987 = vunpack.c.h.b16 %v965
        %v988 = vunpack.c.l.b16 %v966
        %v989 = vunpack.c.h.b16 %v966
        %v990 = vunpack.c.l.b16 %v967
        %v991 = vunpack.c.h.b16 %v967
        %v992 = vpack.c.b16 %v976, %v976
        %v993 = vpack.c.b16 %v977, %v977
        %v994 = vpack.c.b16 %v978, %v978
        %v995 = vpack.c.b16 %v979, %v979
        %v996 = vpack.c.b16 %v980, %v980
        %v997 = vpack.c.b16 %v981, %v981
        %v998 = vpack.c.b16 %v982, %v982
        %v999 = vpack.c.b16 %v983, %v983
        %v1000 = vpack.c.b16 %v984, %v984
        %v1001 = vpack.c.b16 %v985, %v985
        %v1002 = vpack.c.b16 %v986, %v986
        %v1003 = vpack.c.b16 %v987, %v987
        %v1004 = vpack.c.b16 %v988, %v988
        %v1005 = vpack.c.b16 %v989, %v989
        %v1006 = vpack.c.b16 %v990, %v990
        %v1007 = vpack.c.b16 %v991, %v991
        %1024 = vst [vmem:[%s340] sm:$0xf] %v992
        %1025 = vst [vmem:[%s340 + $0x4] sm:$0xf] %v993
        %1026 = vst [vmem:[%s340 + $0x8] sm:$0xf] %v994
        %1027 = vst [vmem:[%s340 + $0xc] sm:$0xf] %v995
        %1028 = vst [vmem:[%s340 + $0x10] sm:$0xf] %v996
        %1029 = vst [vmem:[%s340 + $0x14] sm:$0xf] %v997
        %1030 = vst [vmem:[%s340 + $0x18] sm:$0xf] %v998
        %1031 = vst [vmem:[%s340 + $0x1c] sm:$0xf] %v999
        %1032 = vst [vmem:[%s340 + $0x20] sm:$0xf] %v1000
        %1033 = vst [vmem:[%s340 + $0x24] sm:$0xf] %v1001
        %1034 = vst [vmem:[%s340 + $0x28] sm:$0xf] %v1002
        %1035 = vst [vmem:[%s340 + $0x2c] sm:$0xf] %v1003
        %1036 = vst [vmem:[%s340 + $0x30] sm:$0xf] %v1004
        %1037 = vst [vmem:[%s340 + $0x34] sm:$0xf] %v1005
        %1038 = vst [vmem:[%s340 + $0x38] sm:$0xf] %v1006
        %1039 = vst [vmem:[%s340 + $0x3c] sm:$0xf] %v1007
        %s1040 = sand.u32 %s186, 1
        %s1041 = scalar_lea.sflag [#allocation4], %s1040
        %s1042 = sand.u32 %s186, 1
        %s1043 = smul.addr %s1042, 64
        %s1044 = scalar_lea.vmem [#allocation10], %s1043
        // Predicated region
        $region65: #{tpu_custom_call.1} parent=47 // pred_check
          %p1045 = pneg %p196
        $region66: #{tpu_custom_call.1} parent=47 // pred_check_branch
          %1047 = sbr.rel (%p1045) target = $region68
        $region67: #{tpu_custom_call.1} parent=47 // pred_region
          %s1048 = smul.u32 16, %s26
          %s1050 = ssub.s32 1024, 1024
          %1051 = vsyncadd %s1041, %s1050
          %s1052 = smul.addr %s1048, 64
          %s1053 = scalar_lea.hbm %s7, %s1052
          %s1054 = sshll.u32 %s1044, 4
          %s1055 = int_to_ptr.vmem [resolvable:$true] %s1054
          %1060 = dma.vmem_to_hbm [thread:$0]  %s1055, 1024, %s1053, %s1041, 64, 64, 4
        $region68: #{tpu_custom_call.1} parent=47 // pred_fallthru
          _
      $region48: #{tpu_custom_call.1} parent=5 // pred_fallthru
        _
      %p1061 = scmp.le.s32.totalorder 2, %s21
      // Predicated region
      $region69: #{tpu_custom_call.1} parent=5 // pred_check
        %p1062 = pneg %p1061
      $region70: #{tpu_custom_call.1} parent=5 // pred_check_branch
        %1064 = sbr.rel (%p1062) target = $region72
      $region71: #{tpu_custom_call.1} parent=5 // pred_region
        %s1065 = ssub.s32 %s21, 2
        // Predicated region
        $region73: #{tpu_custom_call.1} parent=71 // pred_check
          %p1066 = pneg %p202
        $region74: #{tpu_custom_call.1} parent=71 // pred_check_branch
          %1068 = sbr.rel (%p1066) target = $region76
        $region75: #{tpu_custom_call.1} parent=71 // pred_region
          %s1069 = sand.u32 %s187, 1
          %s1070 = scalar_lea.sflag [#allocation4], %s1069
          %s1071 = sand.u32 %s187, 1
          %s1072 = smul.addr %s1071, 64
          %s1073 = scalar_lea.vmem [#allocation10], %s1072
          %1074 = dma.done %s1070, 1024
        $region76: #{tpu_custom_call.1} parent=71 // pred_fallthru
          _
      $region72: #{tpu_custom_call.1} parent=5 // pred_fallthru
        _
    $region6: #{tpu_custom_call.1} parent=1 // loop_footer
      %s25 = sadd.s32 1, %s21
    $region7: #{tpu_custom_call.1} parent=1 // loop_footer_branch
      %20 = sbr.rel target = $region3
    $region8: #{tpu_custom_call.1} parent=1 // loop_exit
      _
    %1075 = vsyncpa [#allocation3], 1
    %s1076 = scalar_lea.sflag [#allocation3], 1
    %1077 = vsyncpa %s1076, 1
    %1078 = vsyncpa [#allocation6], 1
    %1079 = vsyncpa [#allocation9], 1
    %1080 = vsyncpa [#allocation4], 1
    %s1081 = scalar_lea.sflag [#allocation4], 1
    %1082 = vsyncpa %s1081, 1

</llo_original>
